<compile_context>
chip_gen: v7x
topology: tpu7x:2x2x1
jax: 0.10.0
libtpu: 0.0.40
codegen_flags: <defaults>
</compile_context>

<pallas_src>
import jax
import jax.numpy as jnp
from jax.experimental import pallas as pl
from jax.experimental.pallas import tpu as pltpu

_LANE = 128
_SUBLANE = 8
_MIB = 1 << 20


def _round_up(v, m):
    return (v + m - 1) // m * m


def _classifier_kernel(x_ref, w1_ref, b1_ref, w2_ref, b2_ref, o_ref):
    # Cast the x tile to the MXU operand dtype *inside* the kernel (no standalone
    # XLA cast pass over x in HBM); f32 accumulation on the MXU.
    x = x_ref[...].astype(w1_ref.dtype)
    h = jnp.dot(x, w1_ref[...], preferred_element_type=jnp.float32)
    # Bias + tanh in f32 (safe on v5e: no bf16 VPU/EUP there). On v6e/v7x a bf16
    # tanh would double EUP throughput if a bundle dump shows that slot binding.
    h = jnp.tanh(h + b1_ref[...])
    # Layer 2 ([H, 1]) as VPU multiply + XLU lane reduce instead of a degenerate
    # MXU matmul: out[b] = sum_h h[b, h] * w2[h].
    out_col = jnp.sum(h * w2_ref[...], axis=-1, keepdims=True)        # (TB, 1)
    # Small XLU transpose so the store is a lane-dense (1, TB) row, not a
    # width-1 masked column store.
    out_row = jnp.transpose(out_col) + b2_ref[0]                       # (1, TB)
    o_ref[...] = out_row.astype(o_ref.dtype)


def _auto_tile_rows(In, H, w_bytes, vmem_budget_bytes, max_rows=8192):
    """Largest batch tile whose VMEM working set fits the budget.

    VMEM lane-pads the last dim to 128 and sublane-pads the 2nd-last to 8, so we
    budget with padded sizes: the double-buffered f32 x tile dominates.
    """
    in_pad = _round_up(max(In, 1), _LANE)
    h_pad = _round_up(max(H, 1), _LANE)
    # Resident weights/biases; assume 2 buffers (conservative if Buffered(1)
    # takes effect, in which case it is 1).
    weight_bytes = 2 * (in_pad * h_pad * w_bytes + 2 * _SUBLANE * h_pad * 4)
    per_row = 2 * in_pad * 4 + 2 * _SUBLANE * 4   # x dbl-buf (f32) + out dbl-buf
    rows = (vmem_budget_bytes - weight_bytes) // per_row
    rows = max(_LANE, min(max_rows, rows))
    return (rows // _LANE) * _LANE


def classifier_forward(x, w1, b1, w2, b2, *, use_bf16=True, block_rows=None,
                       vmem_budget_bytes=24 * _MIB):
    """x: [B, input_size] f32. Returns [B, 1] f32 (same math as the nn.Module).

    w1: [input_size, hidden]   (transposed vs. torch i2h.weight)
    b1: [hidden]
    w2: [1, hidden]            (same layout as torch h2o.weight)
    b2: [1]

    use_bf16: bf16 MXU operands with f32 accumulation (explicit caller choice;
    set False for bit-closer parity with the f32 torch module).
    """
    B, In = x.shape
    H = w1.shape[1]

    compute_dtype = jnp.bfloat16 if use_bf16 else jnp.float32
    w_bytes = 2 if use_bf16 else 4

    # x stays f32 in HBM -- the kernel casts the tile (no extra HBM pass).
    x_in = x.astype(jnp.float32)
    w1_in = w1.astype(compute_dtype)
    b1_row = b1.reshape(1, H).astype(jnp.float32)
    w2_row = w2.reshape(1, H).astype(jnp.float32)
    b2_vec = b2.reshape(1).astype(jnp.float32)

    if B <= _LANE:
        TB = B                      # single full-extent block (always legal)
    else:
        if block_rows is None:
            TB = _auto_tile_rows(In, H, w_bytes, vmem_budget_bytes)
        else:
            TB = max(_LANE, _round_up(block_rows, _LANE))
        # v7x: keep >= 2 grid steps so the "parallel" batch axis shards across
        # both TensorCores (no effect on v5e/v6e).
        TB = min(TB, _round_up(pl.cdiv(B, 2), _LANE))
    grid = (pl.cdiv(B, TB),)

    # Explicit scoped-VMEM limit from the computed working set (+ margin); kept
    # well under v7x's 64 MiB physical VMEM and >= every gen's default.
    in_pad = _round_up(In, _LANE)
    h_pad = _round_up(H, _LANE)
    est = (2 * TB * in_pad * 4                                  # x double-buffer
           + 2 * _SUBLANE * _round_up(max(TB, 1), _LANE) * 4    # out double-buffer
           + 2 * (in_pad * h_pad * w_bytes + 2 * _SUBLANE * h_pad * 4))
    vmem_limit = int(min(48 * _MIB, max(32 * _MIB, est + 4 * _MIB)))

    cost = pl.CostEstimate(
        flops=2 * B * In * H + 2 * B * H,
        transcendentals=B * H,
        bytes_accessed=B * In * 4 + In * H * w_bytes + 2 * H * 4 + 4 + B * 4,
    )

    def _call(weight_pipeline_mode):
        wkw = ({} if weight_pipeline_mode is None
               else dict(pipeline_mode=weight_pipeline_mode))
        return pl.pallas_call(
            _classifier_kernel,
            out_shape=jax.ShapeDtypeStruct((1, B), jnp.float32),
            grid=grid,
            in_specs=[
                # x: one (TB, In) batch tile per grid step (auto double-buffered).
                # Ragged last tile: garbage reads are harmless (row-wise math,
                # tanh bounded) and out-of-range stores are masked.
                pl.BlockSpec((TB, In), lambda i: (i, 0)),
                # Weights/biases: constant index_map -> VMEM-resident, DMA'd once;
                # single-buffered when pl.Buffered(1) is honoured.
                pl.BlockSpec((In, H), lambda i: (0, 0), **wkw),
                pl.BlockSpec((1, H), lambda i: (0, 0), **wkw),
                pl.BlockSpec((1, H), lambda i: (0, 0), **wkw),
                # b2: scalar in SMEM (avoids an (8,128)-padded VMEM tile + DMA).
                pl.BlockSpec(memory_space=pltpu.MemorySpace.SMEM),
            ],
            # Lane-dense output: each step writes a full (1, TB) row.
            out_specs=pl.BlockSpec((1, TB), lambda i: (0, i)),
            compiler_params=pltpu.CompilerParams(
                dimension_semantics=("parallel",),   # v7x: split batch over 2 TCs
                vmem_limit_bytes=vmem_limit,
            ),
            cost_estimate=cost,
        )(x_in, w1_in, b1_row, w2_row, b2_vec)

    try:
        out_row = _call(pl.Buffered(1))
    except Exception:
        # Fallback if this jax build rejects single-buffered resident inputs.
        out_row = _call(None)

    # (1, B) -> [B, 1]: same element order, tiny XLA-side reshape.
    return out_row.reshape(B, 1)


def init_params(key, input_size, hidden_size):
    """Deterministic synthetic init mirroring nn.Linear shapes.

    torch: i2h.weight [hidden, input], i2h.bias [hidden]
           h2o.weight [1, hidden],     h2o.bias [1]
    w1 is stored transposed so the kernel computes x @ w1.
    """
    k1, k2, k3, k4 = jax.random.split(key, 4)
    bound1 = 1.0 / jnp.sqrt(input_size)
    bound2 = 1.0 / jnp.sqrt(hidden_size)
    w1 = jax.random.uniform(k1, (input_size, hidden_size), jnp.float32,
                            -bound1, bound1)
    b1 = jax.random.uniform(k2, (hidden_size,), jnp.float32, -bound1, bound1)
    w2 = jax.random.uniform(k3, (1, hidden_size), jnp.float32, -bound2, bound2)
    b2 = jax.random.uniform(k4, (1,), jnp.float32, -bound2, bound2)
    return w1, b1, w2, b2


def _reference(x, w1, b1, w2, b2, use_bf16=True):
    """Pure-JAX reference with the same operand-dtype / f32-accum math."""
    cd = jnp.bfloat16 if use_bf16 else jnp.float32
    h = jnp.dot(x.astype(cd), w1.astype(cd), preferred_element_type=jnp.float32)
    h = jnp.tanh(h + b1.reshape(1, -1))
    return jnp.sum(h * w2.reshape(1, -1), axis=-1, keepdims=True) + b2.reshape(1, 1)


if __name__ == "__main__":
    input_size, hidden_size = 16, 32
    key = jax.random.PRNGKey(0)
    kx, kp = jax.random.split(key)
    w1, b1, w2, b2 = init_params(kp, input_size, hidden_size)

    # (batch, block_rows): small single-block path; explicit small tile with a
    # ragged masked edge (grid=3); auto tile with the >=2-step v7x cap (grid=2).
    for batch, block_rows in ((8, None), (300, 128), (600, None)):
        x = jax.random.normal(jax.random.fold_in(kx, batch),
                              (batch, input_size), dtype=jnp.float32)
        out = classifier_forward(x, w1, b1, w2, b2, block_rows=block_rows)
        out = jax.block_until_ready(out)

        ref = _reference(x, w1, b1, w2, b2)
        assert out.shape == (batch, 1), out.shape
        assert bool(jnp.allclose(out, ref, atol=2e-3, rtol=2e-3)), (
            float(jnp.max(jnp.abs(out - ref))))

    print("KERNEL_OK")
</pallas_src>

<mosaic_0001>
module attributes {stable_mosaic.version = 11 : i64} {
  func.func @_classifier_kernel(%arg0: i32, %arg1: memref<8x16xf32, #tpu.memory_space<vmem>>, %arg2: memref<16x32xbf16, #tpu.memory_space<vmem>>, %arg3: memref<1x32xf32, #tpu.memory_space<vmem>>, %arg4: memref<1x32xf32, #tpu.memory_space<vmem>>, %arg5: memref<1xf32, #tpu.memory_space<smem>>, %arg6: memref<1x8xf32, #tpu.memory_space<vmem>>) attributes {dimension_semantics = [#tpu.dimension_semantics<parallel>], iteration_bounds = array<i64: 1>, scalar_prefetch = 0 : i64, scratch_operands = 0 : i64, tpu.core_type = #tpu.core_type<tc>, window_params = [{transform_indices = @transform_0, window_bounds = array<i64: 8, 16>}, {pipeline_mode = #tpu.pipeline_mode<synchronous>, transform_indices = @transform_1, window_bounds = array<i64: 16, 32>}, {pipeline_mode = #tpu.pipeline_mode<synchronous>, transform_indices = @transform_2, window_bounds = array<i64: 1, 32>}, {pipeline_mode = #tpu.pipeline_mode<synchronous>, transform_indices = @transform_3, window_bounds = array<i64: 1, 32>}, {transform_indices = @transform_4, window_bounds = array<i64: 1>}, {transform_indices = @transform_5, window_bounds = array<i64: 1, 8>}]} {
    %c0 = arith.constant 0 : index
    %c0_0 = arith.constant 0 : index
    %0 = vector.load %arg1[%c0, %c0_0] : memref<8x16xf32, #tpu.memory_space<vmem>>, vector<8x16xf32>
    %1 = arith.truncf %0 : vector<8x16xf32> to vector<8x16xbf16>
    %c0_1 = arith.constant 0 : index
    %c0_2 = arith.constant 0 : index
    %2 = vector.load %arg2[%c0_1, %c0_2] : memref<16x32xbf16, #tpu.memory_space<vmem>>, vector<16x32xbf16>
    %cst = arith.constant dense<0.000000e+00> : vector<8x32xf32>
    %3 = tpu.matmul %1, %2, %cst {dimension_numbers = #tpu.dot_dimension_numbers<[1], [0], [0], [1], [0, 0, 1, 1], [], []>} : vector<8x16xbf16>, vector<16x32xbf16>, vector<8x32xf32> -> vector<8x32xf32>
    %c0_3 = arith.constant 0 : index
    %c0_4 = arith.constant 0 : index
    %4 = vector.load %arg3[%c0_3, %c0_4] : memref<1x32xf32, #tpu.memory_space<vmem>>, vector<1x32xf32>
    %5 = vector.broadcast %4 : vector<1x32xf32> to vector<8x32xf32>
    %6 = arith.addf %3, %5 : vector<8x32xf32>
    %7 = math.tanh %6 : vector<8x32xf32>
    %c0_5 = arith.constant 0 : index
    %c0_6 = arith.constant 0 : index
    %8 = vector.load %arg4[%c0_5, %c0_6] : memref<1x32xf32, #tpu.memory_space<vmem>>, vector<1x32xf32>
    %9 = vector.broadcast %8 : vector<1x32xf32> to vector<8x32xf32>
    %10 = arith.mulf %7, %9 : vector<8x32xf32>
    %cst_7 = arith.constant dense<0.000000e+00> : vector<8xf32>
    %11 = vector.multi_reduction <add>, %10, %cst_7 [1] : vector<8x32xf32> to vector<8xf32>
    %12 = vector.shape_cast %11 : vector<8xf32> to vector<8x1xf32>
    %13 = tpu.transpose %12, [1, 0] : vector<8x1xf32> -> vector<1x8xf32>
    %c0_8 = arith.constant 0 : index
    %14 = memref.load %arg5[%c0_8] : memref<1xf32, #tpu.memory_space<smem>>
    %15 = vector.broadcast %14 : f32 to vector<1x8xf32>
    %16 = arith.addf %13, %15 : vector<1x8xf32>
    %c0_9 = arith.constant 0 : index
    %c0_10 = arith.constant 0 : index
    %17 = vector.load %arg6[%c0_9, %c0_10] : memref<1x8xf32, #tpu.memory_space<vmem>>, vector<1x8xf32>
    tpu.vector_store %arg6[%c0_9, %c0_10], %16 {strides = array<i32>} : memref<1x8xf32, #tpu.memory_space<vmem>>, vector<1x8xf32>,
    return
  }
  func.func @transform_0(%arg0: i32) -> (i32, i32) {
    %c0_i32 = arith.constant 0 : i32
    %c0_i32_0 = arith.constant 0 : i32
    return %arg0, %c0_i32 : i32, i32
  }
  func.func @transform_1(%arg0: i32) -> (i32, i32) {
    %c0_i32 = arith.constant 0 : i32
    %c0_i32_0 = arith.constant 0 : i32
    %c0_i32_1 = arith.constant 0 : i32
    return %c0_i32, %c0_i32_0 : i32, i32
  }
  func.func @transform_2(%arg0: i32) -> (i32, i32) {
    %c0_i32 = arith.constant 0 : i32
    %c0_i32_0 = arith.constant 0 : i32
    %c0_i32_1 = arith.constant 0 : i32
    return %c0_i32, %c0_i32_0 : i32, i32
  }
  func.func @transform_3(%arg0: i32) -> (i32, i32) {
    %c0_i32 = arith.constant 0 : i32
    %c0_i32_0 = arith.constant 0 : i32
    %c0_i32_1 = arith.constant 0 : i32
    return %c0_i32, %c0_i32_0 : i32, i32
  }
  func.func @transform_4(%arg0: i32) -> i32 {
    %c0_i32 = arith.constant 0 : i32
    %c0_i32_0 = arith.constant 0 : i32
    return %c0_i32 : i32
  }
  func.func @transform_5(%arg0: i32) -> (i32, i32) {
    %c0_i32 = arith.constant 0 : i32
    %c0_i32_0 = arith.constant 0 : i32
    return %c0_i32, %arg0 : i32, i32
  }
}

module attributes {stable_mosaic.version = 11 : i64} {
  func.func @_classifier_kernel(%arg0: i32, %arg1: memref<8x16xf32, #tpu.memory_space<vmem>>, %arg2: memref<16x32xbf16, #tpu.memory_space<vmem>>, %arg3: memref<1x32xf32, #tpu.memory_space<vmem>>, %arg4: memref<1x32xf32, #tpu.memory_space<vmem>>, %arg5: memref<1xf32, #tpu.memory_space<smem>>, %arg6: memref<1x8xf32, #tpu.memory_space<vmem>>) attributes {dimension_semantics = [#tpu.dimension_semantics<parallel>], iteration_bounds = array<i64: 1>, scalar_prefetch = 0 : i64, scratch_operands = 0 : i64, tpu.core_type = #tpu.core_type<tc>, window_params = [{transform_indices = @transform_0, window_bounds = array<i64: 8, 16>}, {pipeline_mode = #tpu.pipeline_mode<synchronous>, transform_indices = @transform_1, window_bounds = array<i64: 16, 32>}, {pipeline_mode = #tpu.pipeline_mode<synchronous>, transform_indices = @transform_2, window_bounds = array<i64: 1, 32>}, {pipeline_mode = #tpu.pipeline_mode<synchronous>, transform_indices = @transform_3, window_bounds = array<i64: 1, 32>}, {transform_indices = @transform_4, window_bounds = array<i64: 1>}, {transform_indices = @transform_5, window_bounds = array<i64: 1, 8>}]} {
    %c0 = arith.constant 0 : index
    %c0_0 = arith.constant 0 : index
    %0 = vector.load %arg1[%c0, %c0_0] : memref<8x16xf32, #tpu.memory_space<vmem>>, vector<8x16xf32>
    %1 = arith.truncf %0 : vector<8x16xf32> to vector<8x16xbf16>
    %c0_1 = arith.constant 0 : index
    %c0_2 = arith.constant 0 : index
    %2 = vector.load %arg2[%c0_1, %c0_2] : memref<16x32xbf16, #tpu.memory_space<vmem>>, vector<16x32xbf16>
    %cst = arith.constant dense<0.000000e+00> : vector<8x32xf32>
    %3 = tpu.matmul %1, %2, %cst {dimension_numbers = #tpu.dot_dimension_numbers<[1], [0], [0], [1], [0, 0, 1, 1], [], []>} : vector<8x16xbf16>, vector<16x32xbf16>, vector<8x32xf32> -> vector<8x32xf32>
    %c0_3 = arith.constant 0 : index
    %c0_4 = arith.constant 0 : index
    %4 = vector.load %arg3[%c0_3, %c0_4] : memref<1x32xf32, #tpu.memory_space<vmem>>, vector<1x32xf32>
    %5 = vector.broadcast %4 : vector<1x32xf32> to vector<8x32xf32>
    %6 = arith.addf %3, %5 : vector<8x32xf32>
    %7 = math.tanh %6 : vector<8x32xf32>
    %c0_5 = arith.constant 0 : index
    %c0_6 = arith.constant 0 : index
    %8 = vector.load %arg4[%c0_5, %c0_6] : memref<1x32xf32, #tpu.memory_space<vmem>>, vector<1x32xf32>
    %9 = vector.broadcast %8 : vector<1x32xf32> to vector<8x32xf32>
    %10 = arith.mulf %7, %9 : vector<8x32xf32>
    %cst_7 = arith.constant dense<0.000000e+00> : vector<8xf32>
    %11 = vector.multi_reduction <add>, %10, %cst_7 [1] : vector<8x32xf32> to vector<8xf32>
    %12 = vector.shape_cast %11 : vector<8xf32> to vector<8x1xf32>
    %13 = tpu.transpose %12, [1, 0] : vector<8x1xf32> -> vector<1x8xf32>
    %c0_8 = arith.constant 0 : index
    %14 = memref.load %arg5[%c0_8] : memref<1xf32, #tpu.memory_space<smem>>
    %15 = vector.broadcast %14 : f32 to vector<1x8xf32>
    %16 = arith.addf %13, %15 : vector<1x8xf32>
    %c0_9 = arith.constant 0 : index
    %c0_10 = arith.constant 0 : index
    %17 = vector.load %arg6[%c0_9, %c0_10] : memref<1x8xf32, #tpu.memory_space<vmem>>, vector<1x8xf32>
    tpu.vector_store %arg6[%c0_9, %c0_10], %16 {strides = array<i32>} : memref<1x8xf32, #tpu.memory_space<vmem>>, vector<1x8xf32>,
    return
  }
  func.func @transform_0(%arg0: i32) -> (i32, i32) {
    %c0_i32 = arith.constant 0 : i32
    %c0_i32_0 = arith.constant 0 : i32
    return %arg0, %c0_i32 : i32, i32
  }
  func.func @transform_1(%arg0: i32) -> (i32, i32) {
    %c0_i32 = arith.constant 0 : i32
    %c0_i32_0 = arith.constant 0 : i32
    %c0_i32_1 = arith.constant 0 : i32
    return %c0_i32, %c0_i32_0 : i32, i32
  }
  func.func @transform_2(%arg0: i32) -> (i32, i32) {
    %c0_i32 = arith.constant 0 : i32
    %c0_i32_0 = arith.constant 0 : i32
    %c0_i32_1 = arith.constant 0 : i32
    return %c0_i32, %c0_i32_0 : i32, i32
  }
  func.func @transform_3(%arg0: i32) -> (i32, i32) {
    %c0_i32 = arith.constant 0 : i32
    %c0_i32_0 = arith.constant 0 : i32
    %c0_i32_1 = arith.constant 0 : i32
    return %c0_i32, %c0_i32_0 : i32, i32
  }
  func.func @transform_4(%arg0: i32) -> i32 {
    %c0_i32 = arith.constant 0 : i32
    %c0_i32_0 = arith.constant 0 : i32
    return %c0_i32 : i32
  }
  func.func @transform_5(%arg0: i32) -> (i32, i32) {
    %c0_i32 = arith.constant 0 : i32
    %c0_i32_0 = arith.constant 0 : i32
    return %c0_i32, %arg0 : i32, i32
  }
}

</mosaic_0001>

<llo_original>
// kernel: tpu_custom_call.1
$region0: #{tpu_custom_call.1}
  #allocation0 [shape = 'u32[]', space=smem, size = 0x4, offset = 0x4, fixed_abs, tag = 'smem constant byte address 0x4 - core index']
  #allocation1 [shape = 'u32[144,128]{1,0:T(1,128)}', space=vmem, size = 0x12000, scoped, tag = 'internal scratch']
  #allocation2 [shape = 'f32[1]{0:T(128)S(6)}', space=smem, size = 0x200, scoped, tag = 'scoped memory for tpu_custom_call.1']
  %s0 = inlined_call_operand.hbm [shape: f32[8,16], index: 0, kind: input, shape index: {}]
  %s1 = inlined_call_operand.hbm [shape: bf16[16,32], index: 1, kind: input, shape index: {}]
  %s2 = inlined_call_operand.vmem [shape: f32[1,32], index: 2, kind: input, shape index: {}]
  %s3 = inlined_call_operand.vmem [shape: f32[1,32], index: 3, kind: input, shape index: {}]
  %s4 = inlined_call_operand.<no memory space> [shape: f32[1], index: 4, kind: input, shape index: {}]
  %s5 = inlined_call_operand.hbm [shape: f32[1,8], index: 5, kind: output, shape index: {}]
  %s6 = sld [smem:[#allocation0]]
  $region38: #{tpu_custom_call.1} parent=0
    _
  %s8 = ssub.s32 1, %s6
  %s9 = scalar_select 0, %s8, %s6
  %10 = sst [smem:[#allocation2]] %s4
  $region1: #{tpu_custom_call.1} parent=0
    #allocation3 [shape = 'u8[4096]{0}', space=vmem, size = 0x1000, scoped, tag = 'input window, operand 0, single buffered']
    #allocation4 [shape = 's32[1]{0}', space=sflag, size = 0x4, scoped, tag = 'scoped memory for tpu_custom_call.1']
    #allocation5 [shape = 's32[1]{0}', space=sflag, size = 0x4, scoped, tag = 'scoped memory for tpu_custom_call.1']
    #allocation6 [shape = 'u8[4096]{0}', space=vmem, size = 0x1000, scoped, tag = 'input window, operand 1, single buffered']
    #allocation7 [shape = 's32[1]{0}', space=sflag, size = 0x4, scoped, tag = 'scoped memory for tpu_custom_call.1']
    #allocation8 [shape = 'u8[512]{0}', space=vmem, size = 0x400, scoped, tag = 'output window, operand 0, single buffered']
    %11 = vsyncpa [#allocation4], 0
    %12 = vsyncpa [#allocation7], 0
    %13 = vsyncpa [#allocation5], 0
    // Predicated region
    $region2: #{tpu_custom_call.1} parent=1 // pred_check
      _
    $region3: #{tpu_custom_call.1} parent=1 // pred_check_branch
      %15 = sbr.rel (0) target = $region5
    $region4: #{tpu_custom_call.1} parent=1 // pred_region
      %s17 = ssub.s32 128, 128
      %18 = vsyncadd [#allocation4], %s17
      %s20 = sshll.u32 [#allocation3], 4
      %s21 = int_to_ptr.vmem [resolvable:$true] %s20
      %23 = dma.hbm_to_vmem [thread:$0]  %s0, 128, %s21, [#allocation4]
    $region5: #{tpu_custom_call.1} parent=1 // pred_fallthru
      _
    // Predicated region
    $region6: #{tpu_custom_call.1} parent=1 // pred_check
      _
    $region7: #{tpu_custom_call.1} parent=1 // pred_check_branch
      %25 = sbr.rel (0) target = $region9
    $region8: #{tpu_custom_call.1} parent=1 // pred_region
      %s27 = ssub.s32 128, 128
      %28 = vsyncadd [#allocation7], %s27
      %s29 = sshll.u32 [#allocation6], 4
      %s30 = int_to_ptr.vmem [resolvable:$true] %s29
      %35 = dma.hbm_to_vmem [thread:$0]  %s1, 128, %s30, [#allocation7], 64, 64, 4
    $region9: #{tpu_custom_call.1} parent=1 // pred_fallthru
      _
    // Predicated region
    $region10: #{tpu_custom_call.1} parent=1 // pred_check
      _
    $region11: #{tpu_custom_call.1} parent=1 // pred_check_branch
      %37 = sbr.rel (0) target = $region13
    $region12: #{tpu_custom_call.1} parent=1 // pred_region
      _
    $region13: #{tpu_custom_call.1} parent=1 // pred_fallthru
      _
    // Predicated region
    $region14: #{tpu_custom_call.1} parent=1 // pred_check
      _
    $region15: #{tpu_custom_call.1} parent=1 // pred_check_branch
      %39 = sbr.rel (0) target = $region17
    $region16: #{tpu_custom_call.1} parent=1 // pred_region
      _
    $region17: #{tpu_custom_call.1} parent=1 // pred_fallthru
      _
    // Predicated region
    $region18: #{tpu_custom_call.1} parent=1 // pred_check
      _
    $region19: #{tpu_custom_call.1} parent=1 // pred_check_branch
      %41 = sbr.rel (0) target = $region21
    $region20: #{tpu_custom_call.1} parent=1 // pred_region
      _
    $region21: #{tpu_custom_call.1} parent=1 // pred_fallthru
      _
    // Predicated region
    $region22: #{tpu_custom_call.1} parent=1 // pred_check
      _
    $region23: #{tpu_custom_call.1} parent=1 // pred_check_branch
      %43 = sbr.rel (0) target = $region25
    $region24: #{tpu_custom_call.1} parent=1 // pred_region
      %44 = dma.done [#allocation4], 128
    $region25: #{tpu_custom_call.1} parent=1 // pred_fallthru
      _
    // Predicated region
    $region26: #{tpu_custom_call.1} parent=1 // pred_check
      _
    $region27: #{tpu_custom_call.1} parent=1 // pred_check_branch
      %46 = sbr.rel (0) target = $region29
    $region28: #{tpu_custom_call.1} parent=1 // pred_region
      %47 = dma.done [#allocation7], 128
    $region29: #{tpu_custom_call.1} parent=1 // pred_fallthru
      _
    %v49 = vld [vmem:[#allocation3] sm:$0xff]
    %v50 = vpack.c.bf16 %v49, %v49
    %v51 = vld [vmem:[#allocation6] sm:$0xf]
    %v52 = vld [vmem:[#allocation6 + $0x4] sm:$0xf]
    %v53 = vld [vmem:[%s2] sm:$0x1]
    %v55 = vlaneseq
    %v56 = vshrl.u32 %v55, 7
    %v57 = vsub.s32 0, %v56
    %v58 = vrot.slane %v53, %v57
    %v62 = vunpack.c.l.b16 %v51
    %v63 = vunpack.c.l.b16 %v52
    %v64 = vpack.c.b16 %v63, %v62
    %vm66 = vcmask 130048
    %v68 = vsel %vm66, %v50, 0
    %70 = vmatprep.subr.bf16.mxu0 0
    %71 = vmatpush1.bf16.msra.mxu0 %v64
    %72 = vmatprep.subr.bf16.mxu0 0
    %73 = vmatpush1.bf16.msra.mxu0 0
    %74 = vmatprep.subr.bf16.mxu0 0
    %75 = vmatpush1.bf16.msra.mxu0 0
    %76 = vmatprep.subr.bf16.mxu0 0
    %77 = vmatpush1.bf16.msra.mxu0 0
    %78 = vmatprep.subr.bf16.mxu0 0
    %79 = vmatpush1.bf16.msra.mxu0 0
    %80 = vmatprep.subr.bf16.mxu0 0
    %81 = vmatpush1.bf16.msra.mxu0 0
    %82 = vmatprep.subr.bf16.mxu0 0
    %83 = vmatpush1.bf16.msra.mxu0 0
    %84 = vmatprep.subr.bf16.mxu0 0
    %85 = vmatpush1.bf16.msra.mxu0 0
    %86 = vmatprep.subr.bf16.mxu0 0
    %87 = vmatpush1.bf16.msra.mxu0 0
    %88 = vmatprep.subr.bf16.mxu0 0
    %89 = vmatpush1.bf16.msra.mxu0 0
    %90 = vmatprep.subr.bf16.mxu0 0
    %91 = vmatpush1.bf16.msra.mxu0 0
    %92 = vmatprep.subr.bf16.mxu0 0
    %93 = vmatpush1.bf16.msra.mxu0 0
    %94 = vmatprep.subr.bf16.mxu0 0
    %95 = vmatpush1.bf16.msra.mxu0 0
    %96 = vmatprep.subr.bf16.mxu0 0
    %97 = vmatpush1.bf16.msra.mxu0 0
    %98 = vmatprep.subr.bf16.mxu0 0
    %99 = vmatpush1.bf16.msra.mxu0 0
    %100 = vmatprep.subr.bf16.mxu0 0
    %101 = vmatpush1.bf16.msra.mxu0 0
    %102 = vmatprep.mubr.bf16.mxu0 0
    %103 = vmatmul.mubr.bf16.gmra.mrb[0].mxu0 %v68
    %v104 = vpop.f32.mrb[0].mxu0
    %v105 = vadd.f32 %v58, %v104
    %v106 = vpop.f32.mrb[0].mxu0
    %v107 = vpop.f32.mrb[0].mxu0
    %v108 = vpop.f32.mrb[0].mxu0
    %109 = vdwg.mxu0
    %v110 = vtanh.pop %v105
    %v111 = vld [vmem:[%s3] sm:$0x1]
    %v113 = vlaneseq
    %v114 = vshrl.u32 %v113, 7
    %v115 = vsub.s32 0, %v114
    %v116 = vrot.slane %v111, %v115
    %v118 = vmul.f32 %v110, %v116
    %vm119 = vcmask 261120
    %v120 = vsel %vm119, %v118, 0.0
    %121 = vadd.xlane.f32.xlu0 %v120
    %v122 = vpop.xlane.xlu0 %121
    %123 = vxpose.xlu0.b32.start [1/16] %v122, 128
    %124 = vxpose.xlu0.b32.cont [2/16] 0.0, 128
    %125 = vxpose.xlu0.b32.cont [3/16] 0.0, 128
    %126 = vxpose.xlu0.b32.cont [4/16] 0.0, 128
    %127 = vxpose.xlu0.b32.cont [5/16] 0.0, 128
    %128 = vxpose.xlu0.b32.cont [6/16] 0.0, 128
    %129 = vxpose.xlu0.b32.cont [7/16] 0.0, 128
    %130 = vxpose.xlu0.b32.cont [8/16] 0.0, 128
    %131 = vxpose.xlu0.b32.cont [9/16] 0.0, 128
    %132 = vxpose.xlu0.b32.cont [10/16] 0.0, 128
    %133 = vxpose.xlu0.b32.cont [11/16] 0.0, 128
    %134 = vxpose.xlu0.b32.cont [12/16] 0.0, 128
    %135 = vxpose.xlu0.b32.cont [13/16] 0.0, 128
    %136 = vxpose.xlu0.b32.cont [14/16] 0.0, 128
    %137 = vxpose.xlu0.b32.cont [15/16] 0.0, 128
    %138 = vxpose.xlu0.b32.end [16/16] 0.0, 128
    %v139 = vpop.trf.xlu0
    %v140 = vpop.trf.xlu0
    %v141 = vpop.trf.xlu0
    %v142 = vpop.trf.xlu0
    %v143 = vpop.trf.xlu0
    %v144 = vpop.trf.xlu0
    %v145 = vpop.trf.xlu0
    %v146 = vpop.trf.xlu0
    %v147 = vpop.trf.xlu0
    %v148 = vpop.trf.xlu0
    %v149 = vpop.trf.xlu0
    %v150 = vpop.trf.xlu0
    %v151 = vpop.trf.xlu0
    %v152 = vpop.trf.xlu0
    %v153 = vpop.trf.xlu0
    %v154 = vpop.trf.xlu0
    %s155 = sld [smem:[#allocation2]]
    %v156 = vstv %s155
    %v157 = vadd.f32 %v139, %v156
    %vm158 = vcmask 57344
    %159 = vst.msk [vmem:[#allocation8] sm:$0x1] %vm158, %v157
    // Predicated region
    $region30: #{tpu_custom_call.1} parent=1 // pred_check
      _
    $region31: #{tpu_custom_call.1} parent=1 // pred_check_branch
      %161 = sbr.rel (0) target = $region33
    $region32: #{tpu_custom_call.1} parent=1 // pred_region
      %s163 = ssub.s32 16, 16
      %164 = vsyncadd [#allocation5], %s163
      %s166 = sshll.u32 [#allocation8], 4
      %s167 = int_to_ptr.vmem [resolvable:$true] %s166
      %169 = dma.vmem_to_hbm [thread:$0]  %s167, 16, %s5, [#allocation5]
    $region33: #{tpu_custom_call.1} parent=1 // pred_fallthru
      _
    // Predicated region
    $region34: #{tpu_custom_call.1} parent=1 // pred_check
      _
    $region35: #{tpu_custom_call.1} parent=1 // pred_check_branch
      %171 = sbr.rel (0) target = $region37
    $region36: #{tpu_custom_call.1} parent=1 // pred_region
      %172 = dma.done [#allocation5], 16
    $region37: #{tpu_custom_call.1} parent=1 // pred_fallthru
      _
    %173 = vsyncpa [#allocation4], 1
    %174 = vsyncpa [#allocation7], 1
    %175 = vsyncpa [#allocation5], 1

// kernel: tpu_custom_call.1
$region0: #{tpu_custom_call.1}
  #allocation0 [shape = 'u32[]', space=smem, size = 0x4, offset = 0x4, fixed_abs, tag = 'smem constant byte address 0x4 - core index']
  #allocation1 [shape = 'u32[144,128]{1,0:T(1,128)}', space=vmem, size = 0x12000, scoped, tag = 'internal scratch']
  #allocation2 [shape = 'f32[1]{0:T(128)S(6)}', space=smem, size = 0x200, scoped, tag = 'scoped memory for tpu_custom_call.1']
  %s0 = inlined_call_operand.hbm [shape: f32[8,16], index: 0, kind: input, shape index: {}]
  %s1 = inlined_call_operand.hbm [shape: bf16[16,32], index: 1, kind: input, shape index: {}]
  %s2 = inlined_call_operand.vmem [shape: f32[1,32], index: 2, kind: input, shape index: {}]
  %s3 = inlined_call_operand.vmem [shape: f32[1,32], index: 3, kind: input, shape index: {}]
  %s4 = inlined_call_operand.<no memory space> [shape: f32[1], index: 4, kind: input, shape index: {}]
  %s5 = inlined_call_operand.hbm [shape: f32[1,8], index: 5, kind: output, shape index: {}]
  %s6 = sld [smem:[#allocation0]]
  $region38: #{tpu_custom_call.1} parent=0
    _
  %s8 = ssub.s32 1, %s6
  %s9 = scalar_select 0, %s8, %s6
  %10 = sst [smem:[#allocation2]] %s4
  $region1: #{tpu_custom_call.1} parent=0
    #allocation3 [shape = 'u8[4096]{0}', space=vmem, size = 0x1000, scoped, tag = 'input window, operand 0, single buffered']
    #allocation4 [shape = 's32[1]{0}', space=sflag, size = 0x4, scoped, tag = 'scoped memory for tpu_custom_call.1']
    #allocation5 [shape = 's32[1]{0}', space=sflag, size = 0x4, scoped, tag = 'scoped memory for tpu_custom_call.1']
    #allocation6 [shape = 'u8[4096]{0}', space=vmem, size = 0x1000, scoped, tag = 'input window, operand 1, single buffered']
    #allocation7 [shape = 's32[1]{0}', space=sflag, size = 0x4, scoped, tag = 'scoped memory for tpu_custom_call.1']
    #allocation8 [shape = 'u8[512]{0}', space=vmem, size = 0x400, scoped, tag = 'output window, operand 0, single buffered']
    %11 = vsyncpa [#allocation4], 0
    %12 = vsyncpa [#allocation7], 0
    %13 = vsyncpa [#allocation5], 0
    // Predicated region
    $region2: #{tpu_custom_call.1} parent=1 // pred_check
      _
    $region3: #{tpu_custom_call.1} parent=1 // pred_check_branch
      %15 = sbr.rel (0) target = $region5
    $region4: #{tpu_custom_call.1} parent=1 // pred_region
      %s17 = ssub.s32 128, 128
      %18 = vsyncadd [#allocation4], %s17
      %s20 = sshll.u32 [#allocation3], 4
      %s21 = int_to_ptr.vmem [resolvable:$true] %s20
      %23 = dma.hbm_to_vmem [thread:$0]  %s0, 128, %s21, [#allocation4]
    $region5: #{tpu_custom_call.1} parent=1 // pred_fallthru
      _
    // Predicated region
    $region6: #{tpu_custom_call.1} parent=1 // pred_check
      _
    $region7: #{tpu_custom_call.1} parent=1 // pred_check_branch
      %25 = sbr.rel (0) target = $region9
    $region8: #{tpu_custom_call.1} parent=1 // pred_region
      %s27 = ssub.s32 128, 128
      %28 = vsyncadd [#allocation7], %s27
      %s29 = sshll.u32 [#allocation6], 4
      %s30 = int_to_ptr.vmem [resolvable:$true] %s29
      %35 = dma.hbm_to_vmem [thread:$0]  %s1, 128, %s30, [#allocation7], 64, 64, 4
    $region9: #{tpu_custom_call.1} parent=1 // pred_fallthru
      _
    // Predicated region
    $region10: #{tpu_custom_call.1} parent=1 // pred_check
      _
    $region11: #{tpu_custom_call.1} parent=1 // pred_check_branch
      %37 = sbr.rel (0) target = $region13
    $region12: #{tpu_custom_call.1} parent=1 // pred_region
      _
    $region13: #{tpu_custom_call.1} parent=1 // pred_fallthru
      _
    // Predicated region
    $region14: #{tpu_custom_call.1} parent=1 // pred_check
      _
    $region15: #{tpu_custom_call.1} parent=1 // pred_check_branch
      %39 = sbr.rel (0) target = $region17
    $region16: #{tpu_custom_call.1} parent=1 // pred_region
      _
    $region17: #{tpu_custom_call.1} parent=1 // pred_fallthru
      _
    // Predicated region
    $region18: #{tpu_custom_call.1} parent=1 // pred_check
      _
    $region19: #{tpu_custom_call.1} parent=1 // pred_check_branch
      %41 = sbr.rel (0) target = $region21
    $region20: #{tpu_custom_call.1} parent=1 // pred_region
      _
    $region21: #{tpu_custom_call.1} parent=1 // pred_fallthru
      _
    // Predicated region
    $region22: #{tpu_custom_call.1} parent=1 // pred_check
      _
    $region23: #{tpu_custom_call.1} parent=1 // pred_check_branch
      %43 = sbr.rel (0) target = $region25
    $region24: #{tpu_custom_call.1} parent=1 // pred_region
      %44 = dma.done [#allocation4], 128
    $region25: #{tpu_custom_call.1} parent=1 // pred_fallthru
      _
    // Predicated region
    $region26: #{tpu_custom_call.1} parent=1 // pred_check
      _
    $region27: #{tpu_custom_call.1} parent=1 // pred_check_branch
      %46 = sbr.rel (0) target = $region29
    $region28: #{tpu_custom_call.1} parent=1 // pred_region
      %47 = dma.done [#allocation7], 128
    $region29: #{tpu_custom_call.1} parent=1 // pred_fallthru
      _
    %v49 = vld [vmem:[#allocation3] sm:$0xff]
    %v50 = vpack.c.bf16 %v49, %v49
    %v51 = vld [vmem:[#allocation6] sm:$0xf]
    %v52 = vld [vmem:[#allocation6 + $0x4] sm:$0xf]
    %v53 = vld [vmem:[%s2] sm:$0x1]
    %v55 = vlaneseq
    %v56 = vshrl.u32 %v55, 7
    %v57 = vsub.s32 0, %v56
    %v58 = vrot.slane %v53, %v57
    %v62 = vunpack.c.l.b16 %v51
    %v63 = vunpack.c.l.b16 %v52
    %v64 = vpack.c.b16 %v63, %v62
    %vm66 = vcmask 130048
    %v68 = vsel %vm66, %v50, 0
    %70 = vmatprep.subr.bf16.mxu0 0
    %71 = vmatpush1.bf16.msra.mxu0 %v64
    %72 = vmatprep.subr.bf16.mxu0 0
    %73 = vmatpush1.bf16.msra.mxu0 0
    %74 = vmatprep.subr.bf16.mxu0 0
    %75 = vmatpush1.bf16.msra.mxu0 0
    %76 = vmatprep.subr.bf16.mxu0 0
    %77 = vmatpush1.bf16.msra.mxu0 0
    %78 = vmatprep.subr.bf16.mxu0 0
    %79 = vmatpush1.bf16.msra.mxu0 0
    %80 = vmatprep.subr.bf16.mxu0 0
    %81 = vmatpush1.bf16.msra.mxu0 0
    %82 = vmatprep.subr.bf16.mxu0 0
    %83 = vmatpush1.bf16.msra.mxu0 0
    %84 = vmatprep.subr.bf16.mxu0 0
    %85 = vmatpush1.bf16.msra.mxu0 0
    %86 = vmatprep.subr.bf16.mxu0 0
    %87 = vmatpush1.bf16.msra.mxu0 0
    %88 = vmatprep.subr.bf16.mxu0 0
    %89 = vmatpush1.bf16.msra.mxu0 0
    %90 = vmatprep.subr.bf16.mxu0 0
    %91 = vmatpush1.bf16.msra.mxu0 0
    %92 = vmatprep.subr.bf16.mxu0 0
    %93 = vmatpush1.bf16.msra.mxu0 0
    %94 = vmatprep.subr.bf16.mxu0 0
    %95 = vmatpush1.bf16.msra.mxu0 0
    %96 = vmatprep.subr.bf16.mxu0 0
    %97 = vmatpush1.bf16.msra.mxu0 0
    %98 = vmatprep.subr.bf16.mxu0 0
    %99 = vmatpush1.bf16.msra.mxu0 0
    %100 = vmatprep.subr.bf16.mxu0 0
    %101 = vmatpush1.bf16.msra.mxu0 0
    %102 = vmatprep.mubr.bf16.mxu0 0
    %103 = vmatmul.mubr.bf16.gmra.mrb[0].mxu0 %v68
    %v104 = vpop.f32.mrb[0].mxu0
    %v105 = vadd.f32 %v58, %v104
    %v106 = vpop.f32.mrb[0].mxu0
    %v107 = vpop.f32.mrb[0].mxu0
    %v108 = vpop.f32.mrb[0].mxu0
    %109 = vdwg.mxu0
    %v110 = vtanh.pop %v105
    %v111 = vld [vmem:[%s3] sm:$0x1]
    %v113 = vlaneseq
    %v114 = vshrl.u32 %v113, 7
    %v115 = vsub.s32 0, %v114
    %v116 = vrot.slane %v111, %v115
    %v118 = vmul.f32 %v110, %v116
    %vm119 = vcmask 261120
    %v120 = vsel %vm119, %v118, 0.0
    %121 = vadd.xlane.f32.xlu0 %v120
    %v122 = vpop.xlane.xlu0 %121
    %123 = vxpose.xlu0.b32.start [1/16] %v122, 128
    %124 = vxpose.xlu0.b32.cont [2/16] 0.0, 128
    %125 = vxpose.xlu0.b32.cont [3/16] 0.0, 128
    %126 = vxpose.xlu0.b32.cont [4/16] 0.0, 128
    %127 = vxpose.xlu0.b32.cont [5/16] 0.0, 128
    %128 = vxpose.xlu0.b32.cont [6/16] 0.0, 128
    %129 = vxpose.xlu0.b32.cont [7/16] 0.0, 128
    %130 = vxpose.xlu0.b32.cont [8/16] 0.0, 128
    %131 = vxpose.xlu0.b32.cont [9/16] 0.0, 128
    %132 = vxpose.xlu0.b32.cont [10/16] 0.0, 128
    %133 = vxpose.xlu0.b32.cont [11/16] 0.0, 128
    %134 = vxpose.xlu0.b32.cont [12/16] 0.0, 128
    %135 = vxpose.xlu0.b32.cont [13/16] 0.0, 128
    %136 = vxpose.xlu0.b32.cont [14/16] 0.0, 128
    %137 = vxpose.xlu0.b32.cont [15/16] 0.0, 128
    %138 = vxpose.xlu0.b32.end [16/16] 0.0, 128
    %v139 = vpop.trf.xlu0
    %v140 = vpop.trf.xlu0
    %v141 = vpop.trf.xlu0
    %v142 = vpop.trf.xlu0
    %v143 = vpop.trf.xlu0
    %v144 = vpop.trf.xlu0
    %v145 = vpop.trf.xlu0
    %v146 = vpop.trf.xlu0
    %v147 = vpop.trf.xlu0
    %v148 = vpop.trf.xlu0
    %v149 = vpop.trf.xlu0
    %v150 = vpop.trf.xlu0
    %v151 = vpop.trf.xlu0
    %v152 = vpop.trf.xlu0
    %v153 = vpop.trf.xlu0
    %v154 = vpop.trf.xlu0
    %s155 = sld [smem:[#allocation2]]
    %v156 = vstv %s155
    %v157 = vadd.f32 %v139, %v156
    %vm158 = vcmask 57344
    %159 = vst.msk [vmem:[#allocation8] sm:$0x1] %vm158, %v157
    // Predicated region
    $region30: #{tpu_custom_call.1} parent=1 // pred_check
      _
    $region31: #{tpu_custom_call.1} parent=1 // pred_check_branch
      %161 = sbr.rel (0) target = $region33
    $region32: #{tpu_custom_call.1} parent=1 // pred_region
      %s163 = ssub.s32 16, 16
      %164 = vsyncadd [#allocation5], %s163
      %s166 = sshll.u32 [#allocation8], 4
      %s167 = int_to_ptr.vmem [resolvable:$true] %s166
      %169 = dma.vmem_to_hbm [thread:$0]  %s167, 16, %s5, [#allocation5]
    $region33: #{tpu_custom_call.1} parent=1 // pred_fallthru
      _
    // Predicated region
    $region34: #{tpu_custom_call.1} parent=1 // pred_check
      _
    $region35: #{tpu_custom_call.1} parent=1 // pred_check_branch
      %171 = sbr.rel (0) target = $region37
    $region36: #{tpu_custom_call.1} parent=1 // pred_region
      %172 = dma.done [#allocation5], 16
    $region37: #{tpu_custom_call.1} parent=1 // pred_fallthru
      _
    %173 = vsyncpa [#allocation4], 1
    %174 = vsyncpa [#allocation7], 1
    %175 = vsyncpa [#allocation5], 1

</llo_original>
